<compile_context>
chip_gen: v7x
topology: tpu7x:2x2x1
jax: 0.10.0
libtpu: 0.0.40
codegen_flags: <defaults>
</compile_context>

<pallas_src>
import functools
import math

import jax
import jax.numpy as jnp
from jax.experimental import pallas as pl
from jax.experimental.pallas import tpu as pltpu


def _temporal_embedding_kernel(day_ref, week_ref, wt_ref, out_ref, *,
                               time_steps: int, t_day: int):
    """Fused dual-table gather via a single two-hot matmul.

    day_ref  : (1, 1, TILE_N) float32  -- x[:, -1, :, 1] tile (lane dim = nodes)
    week_ref : (1, 1, TILE_N) float32  -- x[:, -1, :, 2] tile
    wt_ref   : (F, K) float32          -- [time_day; time_week] stacked, transposed
    out_ref  : (1, F, TILE_N) float32  -- transposed, lane-dense output tile
    """
    F, K = wt_ref.shape
    tile_n = day_ref.shape[-1]

    # Truncation toward zero matches torch .type(torch.LongTensor) for the
    # non-negative inputs this module expects; clamp so out-of-range values
    # cannot produce silent zero rows (PyTorch would raise instead).
    day_idx = (day_ref[0] * time_steps).astype(jnp.int32)          # (1, TILE_N)
    day_idx = jnp.clip(day_idx, 0, t_day - 1)
    week_idx = jnp.clip(week_ref[0].astype(jnp.int32), 0, 6) + t_day

    # Combined "two-hot" selector: row day_idx[n] OR row (t_day + week_idx[n]).
    k_iota = jax.lax.broadcasted_iota(jnp.int32, (K, tile_n), 0)   # (K, TILE_N)
    two_hot = ((k_iota == day_idx) | (k_iota == week_idx)).astype(wt_ref.dtype)

    # Single MXU matmul == time_day[day_idx] + time_week[week_idx], already
    # transposed to (F, TILE_N) so the store is lane-dense along nodes.
    out_ref[0] = jnp.dot(wt_ref[...], two_hot,
                         preferred_element_type=jnp.float32).astype(out_ref.dtype)


def _pick_tile_n(n: int) -> int:
    if n % 128 == 0:
        for cand in (512, 256, 128):
            if n % cand == 0:
                return cand
    return n  # small / ragged N: take the full axis as one block


def temporal_embedding(x, time_day, time_week, *, time_steps: int):
    """Pallas implementation of TemporalEmbedding.forward.

    x         : (B, T, N, C) float32
    time_day  : (time, F) float32
    time_week : (7, F)    float32
    returns   : (B, F, N, 1) float32   (same as the PyTorch module)
    """
    B, T, N, C = x.shape
    t_day, F = time_day.shape
    K = t_day + 7

    # Tiny slices feeding the kernel (N lands on the lane dim of each tile).
    day_frac = x[:, -1:, :, 1]          # (B, 1, N)
    week_val = x[:, -1:, :, 2]          # (B, 1, N)

    # Stack both tables once and transpose: columns indexed by the two-hot.
    wt = jnp.concatenate([time_day, time_week], axis=0).T          # (F, K)

    tile_n = _pick_tile_n(N)
    grid = (B, N // tile_n)

    kernel = functools.partial(_temporal_embedding_kernel,
                               time_steps=time_steps, t_day=t_day)

    out3d = pl.pallas_call(
        kernel,
        out_shape=jax.ShapeDtypeStruct((B, F, N), jnp.float32),
        grid=grid,
        in_specs=[
            pl.BlockSpec((1, 1, tile_n), lambda b, n: (b, 0, n)),
            pl.BlockSpec((1, 1, tile_n), lambda b, n: (b, 0, n)),
            pl.BlockSpec((F, K), lambda b, n: (0, 0)),   # table stays VMEM-resident
        ],
        out_specs=pl.BlockSpec((1, F, tile_n), lambda b, n: (b, 0, n)),
        compiler_params=pltpu.CompilerParams(
            dimension_semantics=("parallel", "parallel")),
    )(day_frac, week_val, wt)

    # Output is already (B, F, N); only the trailing singleton dim remains.
    return out3d[..., None]


def _xavier_uniform(key, shape, dtype=jnp.float32):
    fan_out, fan_in = shape
    bound = math.sqrt(6.0 / (fan_in + fan_out))
    return jax.random.uniform(key, shape, dtype, minval=-bound, maxval=bound)


def _reference(x, time_day, time_week, time_steps):
    day_idx = (x[:, -1, :, 1] * time_steps).astype(jnp.int32)       # (B, N)
    week_idx = x[:, -1, :, 2].astype(jnp.int32)                     # (B, N)
    td = time_day[day_idx]                                          # (B, N, F)
    tw = time_week[week_idx]                                        # (B, N, F)
    return jnp.transpose(td + tw, (0, 2, 1))[..., None]             # (B, F, N, 1)


if __name__ == "__main__":
    # Small shapes consistent with the module.
    B, T, N, C = 2, 8, 16, 3
    TIME = 48       # number of intra-day time slots
    F = 32          # embedding features

    key = jax.random.PRNGKey(0)
    k_td, k_tw, k_x0, k_day, k_week = jax.random.split(key, 5)

    time_day = _xavier_uniform(k_td, (TIME, F))
    time_week = _xavier_uniform(k_tw, (7, F))

    # Build x: channel 0 arbitrary signal, channel 1 = fraction of day in [0,1),
    # channel 2 = day of week as a float in {0,...,6}.
    chan0 = jax.random.normal(k_x0, (B, T, N))
    day_slot = jax.random.randint(k_day, (B, T, N), 0, TIME)
    chan1 = day_slot.astype(jnp.float32) / TIME
    chan2 = jax.random.randint(k_week, (B, T, N), 0, 7).astype(jnp.float32)
    x = jnp.stack([chan0, chan1, chan2], axis=-1)                   # (B, T, N, C)

    out = temporal_embedding(x, time_day, time_week, time_steps=TIME)
    out = jax.block_until_ready(out)

    ref = _reference(x, time_day, time_week, TIME)
    assert out.shape == (B, F, N, 1), out.shape
    assert jnp.allclose(out, ref, atol=1e-5, rtol=1e-5), "mismatch vs reference"

    print("KERNEL_OK")
</pallas_src>

<mosaic_0001>
module attributes {stable_mosaic.version = 11 : i64} {
  func.func @_temporal_embedding_kernel(%arg0: i32, %arg1: i32, %arg2: memref<1x1x16xf32, #tpu.memory_space<vmem>>, %arg3: memref<1x1x16xf32, #tpu.memory_space<vmem>>, %arg4: memref<32x55xf32, #tpu.memory_space<vmem>>, %arg5: memref<1x32x16xf32, #tpu.memory_space<vmem>>) attributes {dimension_semantics = [#tpu.dimension_semantics<parallel>, #tpu.dimension_semantics<parallel>], iteration_bounds = array<i64: 2, 1>, scalar_prefetch = 0 : i64, scratch_operands = 0 : i64, tpu.core_type = #tpu.core_type<tc>, window_params = [{transform_indices = @transform_0, window_bounds = array<i64: 1, 1, 16>}, {transform_indices = @transform_1, window_bounds = array<i64: 1, 1, 16>}, {pipeline_mode = #tpu.pipeline_mode<synchronous>, transform_indices = @transform_2, window_bounds = array<i64: 32, 55>}, {transform_indices = @transform_3, window_bounds = array<i64: 1, 32, 16>}]} {
    %c0 = arith.constant 0 : index
    %c0_0 = arith.constant 0 : index
    %c0_1 = arith.constant 0 : index
    %0 = vector.load %arg2[%c0, %c0_0, %c0_1] : memref<1x1x16xf32, #tpu.memory_space<vmem>>, vector<1x1x16xf32>
    %1 = vector.shape_cast %0 : vector<1x1x16xf32> to vector<1x16xf32>
    %cst = arith.constant 4.800000e+01 : f32
    %2 = vector.broadcast %cst : f32 to vector<1x16xf32>
    %3 = arith.mulf %1, %2 : vector<1x16xf32>
    %4 = arith.fptosi %3 : vector<1x16xf32> to vector<1x16xi32>
    %c0_i32 = arith.constant 0 : i32
    %c47_i32 = arith.constant 47 : i32
    %5 = vector.broadcast %c0_i32 : i32 to vector<1x16xi32>
    %6 = arith.maxsi %5, %4 : vector<1x16xi32>
    %7 = vector.broadcast %c47_i32 : i32 to vector<1x16xi32>
    %8 = arith.minsi %7, %6 : vector<1x16xi32>
    %c0_2 = arith.constant 0 : index
    %c0_3 = arith.constant 0 : index
    %c0_4 = arith.constant 0 : index
    %9 = vector.load %arg3[%c0_2, %c0_3, %c0_4] : memref<1x1x16xf32, #tpu.memory_space<vmem>>, vector<1x1x16xf32>
    %10 = vector.shape_cast %9 : vector<1x1x16xf32> to vector<1x16xf32>
    %11 = arith.fptosi %10 : vector<1x16xf32> to vector<1x16xi32>
    %c0_i32_5 = arith.constant 0 : i32
    %c6_i32 = arith.constant 6 : i32
    %12 = vector.broadcast %c0_i32_5 : i32 to vector<1x16xi32>
    %13 = arith.maxsi %12, %11 : vector<1x16xi32>
    %14 = vector.broadcast %c6_i32 : i32 to vector<1x16xi32>
    %15 = arith.minsi %14, %13 : vector<1x16xi32>
    %c48_i32 = arith.constant 48 : i32
    %16 = vector.broadcast %c48_i32 : i32 to vector<1x16xi32>
    %17 = arith.addi %15, %16 : vector<1x16xi32>
    %18 = tpu.iota {dimensions = array<i32: 0>} : vector<55x16xi32>
    %19 = vector.broadcast %8 : vector<1x16xi32> to vector<55x16xi32>
    %20 = arith.cmpi eq, %18, %19 : vector<55x16xi32>
    %21 = vector.broadcast %17 : vector<1x16xi32> to vector<55x16xi32>
    %22 = arith.cmpi eq, %18, %21 : vector<55x16xi32>
    %23 = arith.ori %20, %22 : vector<55x16xi1>
    %24 = arith.extui %23 : vector<55x16xi1> to vector<55x16xi32>
    %25 = arith.sitofp %24 : vector<55x16xi32> to vector<55x16xf32>
    %c0_6 = arith.constant 0 : index
    %c0_7 = arith.constant 0 : index
    %26 = vector.load %arg4[%c0_6, %c0_7] : memref<32x55xf32, #tpu.memory_space<vmem>>, vector<32x55xf32>
    %cst_8 = arith.constant dense<0.000000e+00> : vector<32x16xf32>
    %27 = tpu.matmul %26, %25, %cst_8 {dimension_numbers = #tpu.dot_dimension_numbers<[1], [0], [0], [1], [0, 0, 1, 1], [], []>} : vector<32x55xf32>, vector<55x16xf32>, vector<32x16xf32> -> vector<32x16xf32>
    %c0_9 = arith.constant 0 : index
    %c0_10 = arith.constant 0 : index
    %c0_11 = arith.constant 0 : index
    %28 = vector.load %arg5[%c0_9, %c0_10, %c0_11] : memref<1x32x16xf32, #tpu.memory_space<vmem>>, vector<1x32x16xf32>
    %29 = vector.shape_cast %28 : vector<1x32x16xf32> to vector<32x16xf32>
    %30 = vector.shape_cast %27 : vector<32x16xf32> to vector<1x32x16xf32>
    tpu.vector_store %arg5[%c0_9, %c0_10, %c0_11], %30 {strides = array<i32>} : memref<1x32x16xf32, #tpu.memory_space<vmem>>, vector<1x32x16xf32>,
    return
  }
  func.func @transform_0(%arg0: i32, %arg1: i32) -> (i32, i32, i32) {
    %c0_i32 = arith.constant 0 : i32
    %c0_i32_0 = arith.constant 0 : i32
    return %arg0, %c0_i32, %arg1 : i32, i32, i32
  }
  func.func @transform_1(%arg0: i32, %arg1: i32) -> (i32, i32, i32) {
    %c0_i32 = arith.constant 0 : i32
    %c0_i32_0 = arith.constant 0 : i32
    return %arg0, %c0_i32, %arg1 : i32, i32, i32
  }
  func.func @transform_2(%arg0: i32, %arg1: i32) -> (i32, i32) {
    %c0_i32 = arith.constant 0 : i32
    %c0_i32_0 = arith.constant 0 : i32
    %c0_i32_1 = arith.constant 0 : i32
    return %c0_i32, %c0_i32_0 : i32, i32
  }
  func.func @transform_3(%arg0: i32, %arg1: i32) -> (i32, i32, i32) {
    %c0_i32 = arith.constant 0 : i32
    %c0_i32_0 = arith.constant 0 : i32
    return %arg0, %c0_i32, %arg1 : i32, i32, i32
  }
}

</mosaic_0001>

<llo_original>
// kernel: tpu_custom_call.1
$region0: #{tpu_custom_call.1}
  #allocation0 [shape = 'u32[]', space=smem, size = 0x4, offset = 0x4, fixed_abs, tag = 'smem constant byte address 0x4 - core index']
  #allocation1 [shape = 'u32[144,128]{1,0:T(1,128)}', space=vmem, size = 0x12000, scoped, tag = 'internal scratch']
  %s0 = inlined_call_operand.hbm [shape: f32[2,1,16], index: 0, kind: input, shape index: {}]
  %s1 = inlined_call_operand.vmem [shape: f32[2,1,16], index: 1, kind: input, shape index: {}]
  %s2 = inlined_call_operand.hbm [shape: f32[32,55], index: 2, kind: input, shape index: {}]
  %s3 = inlined_call_operand.vmem [shape: f32[2,32,16], index: 3, kind: output, shape index: {}]
  %s4 = sld [smem:[#allocation0]]
  $region53: #{tpu_custom_call.1} parent=0
    _
  %s6 = ssub.s32 1, %s4
  %s7 = scalar_select 0, %s6, %s4
  $region1: #{tpu_custom_call.1} parent=0
    #allocation2 [shape = 'u8[1024]{0}', space=vmem, size = 0x400, scoped, tag = 'input window, operand 0']
    #allocation3 [shape = 's32[2]{0}', space=sflag, size = 0x8, scoped, tag = 'scoped memory for tpu_custom_call.1']
    #allocation4 [shape = 'u8[16384]{0}', space=vmem, size = 0x4000, scoped, tag = 'input window, operand 2, single buffered']
    #allocation5 [shape = 's32[1]{0}', space=sflag, size = 0x4, scoped, tag = 'scoped memory for tpu_custom_call.1']
    %8 = vsyncpa [#allocation3], 0
    %s9 = scalar_lea.sflag [#allocation3], 1
    %10 = vsyncpa %s9, 0
    %11 = vsyncpa [#allocation5], 0
    loop: start=0, step=1, limit=4
    $region2: #{tpu_custom_call.1} parent=1 // loop_pre_header
      _
    $region3: #{tpu_custom_call.1} parent=1 // loop_header
      %s13 = sphi 0, %s17
      %p14 = scmp.ge.s32.totalorder %s13, 4
      %s20 = sphi 0, %s32
      %s21 = sphi 0, %s28
      %s22 = sphi 0, %s20
      %s23 = sphi 0, %s21
      %s24 = sphi 0, %s22
      %s25 = sphi 0, %s23
      %s37 = sphi 0, %s39
      %s40 = sphi 0, %s37
      %s41 = sphi 0, %s40
      %s57 = sphi 0, %s41
      %s65 = sphi 0, %s67
      %s68 = sphi 0, %s65
      %s69 = sphi 0, %s68
      %s85 = sphi 0, %s69
      %s89 = sphi 0, %s89
      %s91 = sphi 0, %s89
      %s92 = sphi 0, %s91
      %s106 = sphi 0, %s92
      %s114 = sphi 0, %s116
      %s117 = sphi 0, %s114
      %s118 = sphi 0, %s117
      %s134 = sphi 0, %s118
    $region4: #{tpu_custom_call.1} parent=1 // loop_header_branch
      %16 = sbr.rel (%p14) target = $region8
    $region5: #{tpu_custom_call.1} parent=1 // loop_body
      %s18 = ssub.s32 %s13, 1
      %s19 = ssub.s32 %s13, 2
      %s26 = sadd.s32 1, %s21
      %p27 = scmp.ge.s32.totalorder %s26, 1
      %s28 = scalar_select %p27, 0, %s26
      %s29 = sadd.s32 1, %s20
      %s30 = scalar_select %p27, %s29, %s20
      %p31 = scmp.ge.s32.totalorder %s30, 2
      %s32 = scalar_select %p31, 0, %s30
      %s33 = ssub.s32 %s20, %s32
      %s34 = ssub.s32 %s21, %s28
      %s35 = sor.u32 %s33, %s34
      %p36 = scmp.eq.s32.totalorder %s35, 0
      %s38 = sadd.s32 %s37, 1
      %s39 = scalar_select %p36, %s37, %s38
      %p42 = pneg %p36
      %p43 = scmp.eq.s32.totalorder %s13, 1
      %p44 = por %p42, %p43
      %p45 = scmp.ne.s32.totalorder %s37, %s40
      %p46 = scmp.eq.s32.totalorder %s13, 0
      %p47 = por %p45, %p46
      %p48 = scmp.ne.s32.totalorder %s37, %s40
      %p49 = scmp.eq.s32.totalorder %s18, 1
      %p50 = por %p48, %p49
      %p51 = scmp.ne.s32.totalorder %s40, %s41
      %p52 = scmp.eq.s32.totalorder %s18, 0
      %p53 = por %p51, %p52
      %p54 = scmp.ne.s32.totalorder %s40, %s41
      %p55 = scmp.eq.s32.totalorder %s19, 1
      %p56 = por %p54, %p55
      %p58 = scmp.ne.s32.totalorder %s41, %s57
      %p59 = scmp.eq.s32.totalorder %s19, 0
      %p60 = por %p58, %p59
      %s61 = ssub.s32 %s20, %s32
      %s62 = ssub.s32 %s21, %s28
      %s63 = sor.u32 %s61, %s62
      %p64 = scmp.eq.s32.totalorder %s63, 0
      %s66 = sadd.s32 %s65, 1
      %s67 = scalar_select %p64, %s65, %s66
      %p70 = pneg %p64
      %p71 = scmp.eq.s32.totalorder %s13, 1
      %p72 = por %p70, %p71
      %p73 = scmp.ne.s32.totalorder %s65, %s68
      %p74 = scmp.eq.s32.totalorder %s13, 0
      %p75 = por %p73, %p74
      %p76 = scmp.ne.s32.totalorder %s65, %s68
      %p77 = scmp.eq.s32.totalorder %s18, 1
      %p78 = por %p76, %p77
      %p79 = scmp.ne.s32.totalorder %s68, %s69
      %p80 = scmp.eq.s32.totalorder %s18, 0
      %p81 = por %p79, %p80
      %p82 = scmp.ne.s32.totalorder %s68, %s69
      %p83 = scmp.eq.s32.totalorder %s19, 1
      %p84 = por %p82, %p83
      %p86 = scmp.ne.s32.totalorder %s69, %s85
      %p87 = scmp.eq.s32.totalorder %s19, 0
      %p88 = por %p86, %p87
      %s90 = sadd.s32 %s89, 1
      %p93 = scmp.eq.s32.totalorder %s13, 1
      %p94 = scmp.ne.s32.totalorder %s89, %s91
      %p95 = scmp.eq.s32.totalorder %s13, 0
      %p96 = por %p94, %p95
      %p97 = scmp.ne.s32.totalorder %s89, %s91
      %p98 = scmp.eq.s32.totalorder %s18, 1
      %p99 = por %p97, %p98
      %p100 = scmp.ne.s32.totalorder %s91, %s92
      %p101 = scmp.eq.s32.totalorder %s18, 0
      %p102 = por %p100, %p101
      %p103 = scmp.ne.s32.totalorder %s91, %s92
      %p104 = scmp.eq.s32.totalorder %s19, 1
      %p105 = por %p103, %p104
      %p107 = scmp.ne.s32.totalorder %s92, %s106
      %p108 = scmp.eq.s32.totalorder %s19, 0
      %p109 = por %p107, %p108
      %s110 = ssub.s32 %s20, %s32
      %s111 = ssub.s32 %s21, %s28
      %s112 = sor.u32 %s110, %s111
      %p113 = scmp.eq.s32.totalorder %s112, 0
      %s115 = sadd.s32 %s114, 1
      %s116 = scalar_select %p113, %s114, %s115
      %p119 = pneg %p113
      %p120 = scmp.eq.s32.totalorder %s13, 1
      %p121 = por %p119, %p120
      %p122 = scmp.ne.s32.totalorder %s114, %s117
      %p123 = scmp.eq.s32.totalorder %s13, 0
      %p124 = por %p122, %p123
      %p125 = scmp.ne.s32.totalorder %s114, %s117
      %p126 = scmp.eq.s32.totalorder %s18, 1
      %p127 = por %p125, %p126
      %p128 = scmp.ne.s32.totalorder %s117, %s118
      %p129 = scmp.eq.s32.totalorder %s18, 0
      %p130 = por %p128, %p129
      %p131 = scmp.ne.s32.totalorder %s117, %s118
      %p132 = scmp.eq.s32.totalorder %s19, 1
      %p133 = por %p131, %p132
      %p135 = scmp.ne.s32.totalorder %s118, %s134
      %p136 = scmp.eq.s32.totalorder %s19, 0
      %p137 = por %p135, %p136
      %p138 = scmp.le.s32.totalorder 1, %s13
      %p139 = scmp.lt.s32.totalorder %s13, 3
      %p140 = pnand %p138, %p139
      %p141 = pneg %p140
      // Predicated region
      $region9: #{tpu_custom_call.1} parent=5 // pred_check
        _
      $region10: #{tpu_custom_call.1} parent=5 // pred_check_branch
        %143 = sbr.rel (%p140) target = $region12
      $region11: #{tpu_custom_call.1} parent=5 // pred_region
        %s144 = ssub.s32 %s13, 1
        // Predicated region
        $region13: #{tpu_custom_call.1} parent=11 // pred_check
          %p145 = pneg %p102
        $region14: #{tpu_custom_call.1} parent=11 // pred_check_branch
          %147 = sbr.rel (%p145) target = $region16
        $region15: #{tpu_custom_call.1} parent=11 // pred_region
          %s149 = ssub.s32 512, 512
          %150 = vsyncadd [#allocation5], %s149
          %s151 = sshll.u32 [#allocation4], 4
          %s152 = int_to_ptr.vmem [resolvable:$true] %s151
          %157 = dma.hbm_to_vmem [thread:$0]  %s2, 512, %s152, [#allocation5], 128, 128, 8
        $region16: #{tpu_custom_call.1} parent=11 // pred_fallthru
          _
      $region12: #{tpu_custom_call.1} parent=5 // pred_fallthru
        _
      %p158 = scmp.lt.s32.totalorder %s13, 2
      // Predicated region
      $region17: #{tpu_custom_call.1} parent=5 // pred_check
        %p159 = pneg %p158
      $region18: #{tpu_custom_call.1} parent=5 // pred_check_branch
        %161 = sbr.rel (%p159) target = $region20
      $region19: #{tpu_custom_call.1} parent=5 // pred_region
        // Predicated region
        $region21: #{tpu_custom_call.1} parent=19 // pred_check
          %p162 = pneg %p47
        $region22: #{tpu_custom_call.1} parent=19 // pred_check_branch
          %164 = sbr.rel (%p162) target = $region24
        $region23: #{tpu_custom_call.1} parent=19 // pred_region
          %s165 = sand.u32 %s37, 1
          %s166 = scalar_lea.sflag [#allocation3], %s165
          %s167 = sand.u32 %s37, 1
          %s168 = scalar_lea.vmem [#allocation2], %s167
          %s170 = ssub.s32 16, 16
          %171 = vsyncadd %s166, %s170
          %s172 = sadd.s32 %s21, %s20
          %s173 = smul.addr %s172, 16
          %s174 = scalar_lea.hbm %s0, %s173
          %s176 = sshll.u32 %s168, 4
          %s177 = int_to_ptr.vmem [resolvable:$true] %s176
          %179 = dma.hbm_to_vmem [thread:$0]  %s174, 16, %s177, %s166
        $region24: #{tpu_custom_call.1} parent=19 // pred_fallthru
          _
        // Predicated region
        $region25: #{tpu_custom_call.1} parent=19 // pred_check
          %p180 = pneg %p75
        $region26: #{tpu_custom_call.1} parent=19 // pred_check_branch
          %182 = sbr.rel (%p180) target = $region28
        $region27: #{tpu_custom_call.1} parent=19 // pred_region
          %p183 = scmp.lt.s32.totalorder %s20, 1
          %s184 = scalar_select %p183, %s20, 1
          %p185 = scmp.lt.s32.totalorder %s21, 0
          %s186 = scalar_select %p185, %s21, 0
          %s187 = sadd.s32 %s186, %s184
          %s188 = scalar_lea.vmem %s1, %s187
        $region28: #{tpu_custom_call.1} parent=19 // pred_fallthru
          _
      $region20: #{tpu_custom_call.1} parent=5 // pred_fallthru
        _
      %p189 = scmp.le.s32.totalorder 1, %s13
      %p190 = scmp.lt.s32.totalorder %s13, 3
      %p191 = pnand %p189, %p190
      %p192 = pneg %p191
      // Predicated region
      $region29: #{tpu_custom_call.1} parent=5 // pred_check
        _
      $region30: #{tpu_custom_call.1} parent=5 // pred_check_branch
        %194 = sbr.rel (%p191) target = $region32
      $region31: #{tpu_custom_call.1} parent=5 // pred_region
        %s195 = ssub.s32 %s13, 1
        %s196 = sand.u32 %s40, 1
        %s197 = scalar_lea.sflag [#allocation3], %s196
        %s198 = sand.u32 %s40, 1
        %s199 = scalar_lea.vmem [#allocation2], %s198
        // Predicated region
        $region33: #{tpu_custom_call.1} parent=31 // pred_check
          %p200 = pneg %p53
        $region34: #{tpu_custom_call.1} parent=31 // pred_check_branch
          %202 = sbr.rel (%p200) target = $region36
        $region35: #{tpu_custom_call.1} parent=31 // pred_region
          %203 = dma.done %s197, 16
        $region36: #{tpu_custom_call.1} parent=31 // pred_fallthru
          _
        // Predicated region
        $region37: #{tpu_custom_call.1} parent=31 // pred_check
          %p204 = pneg %p102
        $region38: #{tpu_custom_call.1} parent=31 // pred_check_branch
          %206 = sbr.rel (%p204) target = $region40
        $region39: #{tpu_custom_call.1} parent=31 // pred_region
          %207 = dma.done [#allocation5], 512
        $region40: #{tpu_custom_call.1} parent=31 // pred_fallthru
          _
        %s208 = sand.u32 %s40, 1
        %s209 = scalar_lea.sflag [#allocation3], %s208
        %s210 = sand.u32 %s40, 1
        %s211 = scalar_lea.vmem [#allocation2], %s210
        %p212 = pneg %p53
        %p213 = pneg %p50
        %p214 = scmp.lt.s32.totalorder %s22, 1
        %s215 = scalar_select %p214, %s22, 1
        %p216 = scmp.lt.s32.totalorder %s23, 0
        %s217 = scalar_select %p216, %s23, 0
        %s218 = sadd.s32 %s217, %s215
        %s219 = scalar_lea.vmem %s1, %s218
        %p220 = pneg %p81
        %p221 = pneg %p78
        %p222 = pneg %p102
        %p223 = pneg %p99
        %p224 = pneg %p130
        %p225 = pneg %p127
        %p226 = scmp.lt.s32.totalorder %s22, 1
        %s227 = scalar_select %p226, %s22, 1
        %p228 = scmp.lt.s32.totalorder %s23, 0
        %s229 = scalar_select %p228, %s23, 0
        %s230 = smul.addr %s227, 4
        %s231 = sadd.s32 %s229, %s230
        %s232 = smul.addr %s231, 8
        %s233 = scalar_lea.vmem %s3, %s232
        %p234 = scmp.lt.s32.totalorder %s22, 1
        %s235 = scalar_select %p234, %s22, 1
        %p236 = scmp.lt.s32.totalorder %s23, 0
        %s237 = scalar_select %p236, %s23, 0
        %s238 = sadd.s32 %s237, %s235
        %s239 = scalar_lea.vmem %s1, %s238
        %p240 = scmp.lt.s32.totalorder %s22, 1
        %s241 = scalar_select %p240, %s22, 1
        %p242 = scmp.lt.s32.totalorder %s23, 0
        %s243 = scalar_select %p242, %s23, 0
        %s244 = smul.addr %s241, 4
        %s245 = sadd.s32 %s243, %s244
        %s246 = smul.addr %s245, 8
        %s247 = scalar_lea.vmem %s3, %s246
        %v248 = vld [vmem:[%s199] sm:$0x1]
        %v249 = vmul.f32 %v248, 48.0
        %v250 = vcvt.f32.s32.to.zero.pseudo %v249
        %vm251 = vcmp.gt.s32.totalorder %v250, 0
        %v252 = vsel %vm251, %v250, 0
        %vm253 = vcmp.lt.s32.totalorder %v252, 47
        %v254 = vsel %vm253, %v252, 47
        %v255 = vld [vmem:[%s239] sm:$0x1]
        %v256 = vcvt.f32.s32.to.zero.pseudo %v255
        %vm257 = vcmp.gt.s32.totalorder %v256, 0
        %v258 = vsel %vm257, %v256, 0
        %vm259 = vcmp.lt.s32.totalorder %v258, 6
        %v260 = vsel %vm259, %v258, 6
        %v261 = vadd.s32 %v260, 48
        %v262 = vlaneseq
        %v263 = vshrl.u32 %v262, 7
        %v264 = vadd.s32 %v263, 8
        %v265 = vadd.s32 %v263, 16
        %v266 = vadd.s32 %v263, 24
        %v267 = vadd.s32 %v263, 32
        %v268 = vadd.s32 %v263, 40
        %v269 = vadd.s32 %v263, 48
        %v270 = vlaneseq
        %v271 = vshrl.u32 %v270, 7
        %v272 = vsub.s32 0, %v271
        %v273 = vrot.slane %v254, %v272
        %vm274 = vcmp.eq.s32.totalorder %v263, %v273
        %vm275 = vcmp.eq.s32.totalorder %v264, %v273
        %vm276 = vcmp.eq.s32.totalorder %v265, %v273
        %vm277 = vcmp.eq.s32.totalorder %v266, %v273
        %vm278 = vcmp.eq.s32.totalorder %v267, %v273
        %vm279 = vcmp.eq.s32.totalorder %v268, %v273
        %vm280 = vcmp.eq.s32.totalorder %v269, %v273
        %v281 = vlaneseq
        %v282 = vshrl.u32 %v281, 7
        %v283 = vsub.s32 0, %v282
        %v284 = vrot.slane %v261, %v283
        %vm285 = vcmp.eq.s32.totalorder %v263, %v284
        %vm286 = vcmp.eq.s32.totalorder %v264, %v284
        %vm287 = vcmp.eq.s32.totalorder %v265, %v284
        %vm288 = vcmp.eq.s32.totalorder %v266, %v284
        %vm289 = vcmp.eq.s32.totalorder %v267, %v284
        %vm290 = vcmp.eq.s32.totalorder %v268, %v284
        %vm291 = vcmp.eq.s32.totalorder %v269, %v284
        %vm292 = vmor %vm274, %vm285
        %vm293 = vmor %vm275, %vm286
        %vm294 = vmor %vm276, %vm287
        %vm295 = vmor %vm277, %vm288
        %vm296 = vmor %vm278, %vm289
        %vm297 = vmor %vm279, %vm290
        %vm298 = vmor %vm280, %vm291
        %v299 = vsel %vm292, 1, 0
        %v300 = vsel %vm293, 1, 0
        %v301 = vsel %vm294, 1, 0
        %v302 = vsel %vm295, 1, 0
        %v303 = vsel %vm296, 1, 0
        %v304 = vsel %vm297, 1, 0
        %v305 = vsel %vm298, 1, 0
        %v306 = vcvt.s32.f32 %v299
        %v307 = vcvt.s32.f32 %v300
        %v308 = vcvt.s32.f32 %v301
        %v309 = vcvt.s32.f32 %v302
        %v310 = vcvt.s32.f32 %v303
        %v311 = vcvt.s32.f32 %v304
        %v312 = vcvt.s32.f32 %v305
        %v313 = vld [vmem:[#allocation4] sm:$0xff]
        %v314 = vld [vmem:[#allocation4 + $0x8] sm:$0xff]
        %v315 = vld [vmem:[#allocation4 + $0x10] sm:$0xff]
        %v316 = vld [vmem:[#allocation4 + $0x18] sm:$0xff]
        %vm317 = vcmask 449536
        %v319 = vsel %vm317, %v313, 0
        %v322 = vsel %vm317, %v314, 0
        %v325 = vsel %vm317, %v315, 0
        %v328 = vsel %vm317, %v316, 0
        %vm330 = vcmask 1046528
        %v332 = vsel %vm330, %v312, 0
        %334 = vmatprep.subr.mxu0 0.0
        %335 = vmatpush1.msra.mxu0 %v306
        %336 = vmatprep.subr.mxu0 0.0
        %337 = vmatpush1.msra.mxu0 %v307
        %338 = vmatprep.subr.mxu0 0.0
        %339 = vmatpush1.msra.mxu0 %v308
        %340 = vmatprep.subr.mxu0 0.0
        %341 = vmatpush1.msra.mxu0 %v309
        %342 = vmatprep.subr.mxu0 0.0
        %343 = vmatpush1.msra.mxu0 %v310
        %344 = vmatprep.subr.mxu0 0.0
        %345 = vmatpush1.msra.mxu0 %v311
        %346 = vmatprep.subr.mxu0 0.0
        %347 = vmatpush1.msra.mxu0 %v332
        %348 = vmatprep.subr.mxu0 0.0
        %349 = vmatpush1.msra.mxu0 0.0
        %350 = vmatprep.subr.mxu0 0.0
        %351 = vmatpush1.msra.mxu0 0.0
        %352 = vmatprep.subr.mxu0 0.0
        %353 = vmatpush1.msra.mxu0 0.0
        %354 = vmatprep.subr.mxu0 0.0
        %355 = vmatpush1.msra.mxu0 0.0
        %356 = vmatprep.subr.mxu0 0.0
        %357 = vmatpush1.msra.mxu0 0.0
        %358 = vmatprep.subr.mxu0 0.0
        %359 = vmatpush1.msra.mxu0 0.0
        %360 = vmatprep.subr.mxu0 0.0
        %361 = vmatpush1.msra.mxu0 0.0
        %362 = vmatprep.subr.mxu0 0.0
        %363 = vmatpush1.msra.mxu0 0.0
        %364 = vmatprep.subr.mxu0 0.0
        %365 = vmatpush1.msra.mxu0 0.0
        %366 = vmatprep.subr.mxu0 0.0
        %367 = vmatpush1.msra.mxu0 0.0
        %368 = vmatprep.subr.mxu0 0.0
        %369 = vmatpush1.msra.mxu0 0.0
        %370 = vmatprep.subr.mxu0 0.0
        %371 = vmatpush1.msra.mxu0 0.0
        %372 = vmatprep.subr.mxu0 0.0
        %373 = vmatpush1.msra.mxu0 0.0
        %374 = vmatprep.subr.mxu0 0.0
        %375 = vmatpush1.msra.mxu0 0.0
        %376 = vmatprep.subr.mxu0 0.0
        %377 = vmatpush1.msra.mxu0 0.0
        %378 = vmatprep.subr.mxu0 0.0
        %379 = vmatpush1.msra.mxu0 0.0
        %380 = vmatprep.subr.mxu0 0.0
        %381 = vmatpush1.msra.mxu0 0.0
        %382 = vmatprep.subr.mxu0 0.0
        %383 = vmatpush1.msra.mxu0 0.0
        %384 = vmatprep.subr.mxu0 0.0
        %385 = vmatpush1.msra.mxu0 0.0
        %386 = vmatprep.subr.mxu0 0.0
        %387 = vmatpush1.msra.mxu0 0.0
        %388 = vmatprep.subr.mxu0 0.0
        %389 = vmatpush1.msra.mxu0 0.0
        %390 = vmatprep.subr.mxu0 0.0
        %391 = vmatpush1.msra.mxu0 0.0
        %392 = vmatprep.subr.mxu0 0.0
        %393 = vmatpush1.msra.mxu0 0.0
        %394 = vmatprep.subr.mxu0 0.0
        %395 = vmatpush1.msra.mxu0 0.0
        %396 = vmatprep.subr.mxu0 0.0
        %397 = vmatpush1.msra.mxu0 0.0
        %398 = vmatprep.mubr.f32.mxu0 0.0
        %399 = vmatmul.mubr.f32.gmra.mrb[0].mxu0 %v319
        %v400 = vpop.f32.mrb[0].mxu0
        %v401 = vadd.f32 0.0, %v400
        %v402 = vpop.f32.mrb[0].mxu0
        %403 = vmatprep.mubr.f32.mxu0 0.0
        %404 = vmatmul.mubr.f32.gmra.mrb[0].mxu0 %v322
        %v405 = vpop.f32.mrb[0].mxu0
        %v406 = vadd.f32 0.0, %v405
        %v407 = vpop.f32.mrb[0].mxu0
        %408 = vmatprep.mubr.f32.mxu0 0.0
        %409 = vmatmul.mubr.f32.gmra.mrb[0].mxu0 %v325
        %v410 = vpop.f32.mrb[0].mxu0
        %v411 = vadd.f32 0.0, %v410
        %v412 = vpop.f32.mrb[0].mxu0
        %413 = vmatprep.mubr.f32.mxu0 0.0
        %414 = vmatmul.mubr.f32.gmra.mrb[0].mxu0 %v328
        %v415 = vpop.f32.mrb[0].mxu0
        %v416 = vadd.f32 0.0, %v415
        %v417 = vpop.f32.mrb[0].mxu0
        %418 = vdwg.mxu0
        %vm419 = vcmask 130048
        %420 = vst.msk [vmem:[%s247] sm:$0xff] %vm419, %v401
        %421 = vst.msk [vmem:[%s247 + $0x8] sm:$0xff] %vm419, %v406
        %422 = vst.msk [vmem:[%s247 + $0x10] sm:$0xff] %vm419, %v411
        %423 = vst.msk [vmem:[%s247 + $0x18] sm:$0xff] %vm419, %v416
        %p424 = scmp.lt.s32.totalorder %s22, 1
        %s425 = scalar_select %p424, %s22, 1
        %p426 = scmp.lt.s32.totalorder %s23, 0
        %s427 = scalar_select %p426, %s23, 0
        %s428 = smul.addr %s425, 4
        %s429 = sadd.s32 %s427, %s428
        %s430 = smul.addr %s429, 8
        %s431 = scalar_lea.vmem %s3, %s430
        // Predicated region
        $region41: #{tpu_custom_call.1} parent=31 // pred_check
          %p432 = pneg %p127
        $region42: #{tpu_custom_call.1} parent=31 // pred_check_branch
          %434 = sbr.rel (%p432) target = $region44
        $region43: #{tpu_custom_call.1} parent=31 // pred_region
          _
        $region44: #{tpu_custom_call.1} parent=31 // pred_fallthru
          _
      $region32: #{tpu_custom_call.1} parent=5 // pred_fallthru
        _
      %p435 = scmp.le.s32.totalorder 2, %s13
      // Predicated region
      $region45: #{tpu_custom_call.1} parent=5 // pred_check
        %p436 = pneg %p435
      $region46: #{tpu_custom_call.1} parent=5 // pred_check_branch
        %438 = sbr.rel (%p436) target = $region48
      $region47: #{tpu_custom_call.1} parent=5 // pred_region
        %s439 = ssub.s32 %s13, 2
        // Predicated region
        $region49: #{tpu_custom_call.1} parent=47 // pred_check
          %p440 = pneg %p133
        $region50: #{tpu_custom_call.1} parent=47 // pred_check_branch
          %442 = sbr.rel (%p440) target = $region52
        $region51: #{tpu_custom_call.1} parent=47 // pred_region
          %p443 = scmp.lt.s32.totalorder %s24, 1
          %s444 = scalar_select %p443, %s24, 1
          %p445 = scmp.lt.s32.totalorder %s25, 0
          %s446 = scalar_select %p445, %s25, 0
          %s447 = smul.addr %s444, 4
          %s448 = sadd.s32 %s446, %s447
          %s449 = smul.addr %s448, 8
          %s450 = scalar_lea.vmem %s3, %s449
        $region52: #{tpu_custom_call.1} parent=47 // pred_fallthru
          _
      $region48: #{tpu_custom_call.1} parent=5 // pred_fallthru
        _
    $region6: #{tpu_custom_call.1} parent=1 // loop_footer
      %s17 = sadd.s32 1, %s13
    $region7: #{tpu_custom_call.1} parent=1 // loop_footer_branch
      %12 = sbr.rel target = $region3
    $region8: #{tpu_custom_call.1} parent=1 // loop_exit
      _
    %451 = vsyncpa [#allocation3], 1
    %s452 = scalar_lea.sflag [#allocation3], 1
    %453 = vsyncpa %s452, 1
    %454 = vsyncpa [#allocation5], 1

</llo_original>
